<compile_context>
chip_gen: v7x
topology: tpu7x:2x2x1
jax: 0.10.0
libtpu: 0.0.40
codegen_flags: <defaults>
</compile_context>

<pallas_src>
import math

import jax
import jax.numpy as jnp
import numpy as np
from jax.experimental import pallas as pl
from jax.experimental.pallas import tpu as pltpu


# ----------------------------- parameter setup ----------------------------- #

def fixed_embedding_table(c_in: int, d_model: int) -> jnp.ndarray:
    """Deterministic sinusoidal table, identical to FixedEmbedding.__init__."""
    position = jnp.arange(c_in, dtype=jnp.float32)[:, None]                 # (c_in, 1)
    div_term = jnp.exp(
        jnp.arange(0, d_model, 2, dtype=jnp.float32)
        * -(math.log(10000.0) / d_model)
    )                                                                        # (d_model/2,)
    w = jnp.zeros((c_in, d_model), dtype=jnp.float32)
    w = w.at[:, 0::2].set(jnp.sin(position * div_term))
    w = w.at[:, 1::2].set(jnp.cos(position * div_term))
    return w


def _vocab_sizes(freq: str):
    # Column order matches PyTorch: x[:,:,0]=month, 1=day, 2=weekday, 3=hour, 4=minute
    return [13, 32, 7, 24] + ([4] if freq == "t" else [])


def make_fused_temporal_table(d_model: int, freq: str = "h",
                              table_dtype=jnp.float32):
    """Concatenate per-feature tables along vocab, pad to K=128 MXU rows."""
    sizes = _vocab_sizes(freq)
    tabs = [fixed_embedding_table(c, d_model) for c in sizes]
    fused = jnp.concatenate(tabs, axis=0)                       # (76 or 80, d_model)
    k_pad = 128                                                  # review #8: keep K=128
    fused = jnp.pad(fused, ((0, k_pad - fused.shape[0]), (0, 0)))
    offsets = jnp.asarray(
        np.concatenate([[0], np.cumsum(sizes[:-1])]), dtype=jnp.int32)       # (F,)
    return fused.astype(table_dtype), offsets


# -------------------------------- kernels ----------------------------------- #

def _multihot_matmul(offs_ref, idx_ref, table_ref):
    """
    offs_ref  : (F,)  int32 in SMEM (scalar prefetch)  -- per-column vocab offsets
    idx_ref   : (F, TN) int32  -- raw time-feature indices, lane-dense layout
    table_ref : (128, d_model) -- fused embedding table (bf16 or f32)
    returns   : (TN, d_model) float32 accumulator
    """
    f, tn = idx_ref.shape
    k = table_ref.shape[0]                                # 128

    # One iota, F compares OR'd -> multi-hot (offset ranges are disjoint, so
    # OR == sum).  0/1 values are exact in bf16.  The offset add is F scalar
    # adds on the VPU; the (F, TN) -> per-row broadcast is a small XLU
    # transpose (XLU is idle in this kernel).
    lane = jax.lax.broadcasted_iota(jnp.int32, (tn, k), 1)
    hit = lane == (idx_ref[0, :] + offs_ref[0])[:, None]
    for j in range(1, f):
        hit = hit | (lane == (idx_ref[j, :] + offs_ref[j])[:, None])
    multihot = hit.astype(table_ref.dtype)                # (TN, 128)

    # Single K=128 MXU matmul with f32 accumulation.
    return jnp.dot(multihot, table_ref[...], preferred_element_type=jnp.float32)


def temporal_embedding_kernel(offs_ref, idx_ref, table_ref, out_ref):
    out_ref[...] = _multihot_matmul(offs_ref, idx_ref, table_ref).astype(out_ref.dtype)


def temporal_embedding_fused_add_kernel(offs_ref, idx_ref, table_ref,
                                        addend_ref, out_ref):
    acc = _multihot_matmul(offs_ref, idx_ref, table_ref)
    out_ref[...] = (acc + addend_ref[...].astype(jnp.float32)).astype(out_ref.dtype)


# ------------------------------- wrapper ------------------------------------ #

def _round_up(a: int, m: int) -> int:
    return (a + m - 1) // m * m


def _auto_tile(d_model, out_itemsize, table_itemsize, addend_itemsize, n,
               budget_bytes=22 << 20, tile_cap=8192):
    """Pick the largest 128-aligned row tile whose working set fits ~22 MiB
    (safe on v7x's 64 MiB VMEM once the scoped limit is raised; v5e/v6e have
    128 MiB so this is conservative there)."""
    per_row = (2 * d_model * out_itemsize          # double-buffered output block
               + 2 * d_model * addend_itemsize     # double-buffered addend block
               + d_model * 4                       # f32 accumulator intermediate
               + 2 * 8 * 4                         # idx block (<=8 sublanes, dbl-buf)
               + 128 * table_itemsize)             # multi-hot row
    tile = int(budget_bytes // per_row)
    tile = max(128, min(tile_cap, tile))
    tile = (tile // 128) * 128
    return min(tile, _round_up(n, 128))


def temporal_embedding(x: jnp.ndarray, fused_table: jnp.ndarray,
                       offsets: jnp.ndarray, *, addend: jnp.ndarray | None = None,
                       out_dtype=jnp.float32, tile_n: int | None = None) -> jnp.ndarray:
    """x: (B, L, F_in) integer time-feature marks.  Returns (B, L, d_model).

    addend: optional (B, L, d_model) tensor (e.g. value+positional embedding of
    the surrounding DataEmbedding) added in-kernel to avoid an extra HBM pass.
    """
    B, L, f_in = x.shape
    f_used = int(offsets.shape[0])
    assert f_in >= f_used, "input must provide at least the used time-feature columns"
    k, d_model = fused_table.shape
    N = B * L

    out_itemsize = jnp.dtype(out_dtype).itemsize
    table_itemsize = fused_table.dtype.itemsize
    addend_itemsize = addend.dtype.itemsize if addend is not None else 0

    # Lane-dense (F, N) index layout: contiguous DMA per tile, ~16x less idx VMEM.
    idx_t = jnp.transpose(x.reshape(N, f_in)[:, :f_used].astype(jnp.int32))   # (F, N)

    # Tile selection (generation-aware via the VMEM budget) + N padding.
    if tile_n is None:
        tile = _auto_tile(d_model, out_itemsize, table_itemsize, addend_itemsize, N)
    else:
        tile = _round_up(max(int(tile_n), 128), 128)
        tile = min(tile, _round_up(N, 128))
    n_pad = _round_up(N, tile)

    if n_pad != N:
        # Padded tail rows use index 0 (a valid "month" row): they compute real
        # embeddings that are sliced off below.  Do NOT replace with a sentinel —
        # anything outside [0, 128) would fall off the 128-lane multi-hot.
        idx_t = jnp.pad(idx_t, ((0, 0), (0, n_pad - N)))

    args = [offsets, idx_t, fused_table]
    in_specs = [
        pl.BlockSpec((f_used, tile), lambda i, offs: (0, i)),   # lane-dense idx tile
        pl.BlockSpec((k, d_model), lambda i, offs: (0, 0)),     # whole fused table
    ]
    if addend is not None:
        a2 = addend.reshape(N, d_model)
        if n_pad != N:
            a2 = jnp.pad(a2, ((0, n_pad - N), (0, 0)))
        args.append(a2)
        in_specs.append(pl.BlockSpec((tile, d_model), lambda i, offs: (i, 0)))
        kernel = temporal_embedding_fused_add_kernel
    else:
        kernel = temporal_embedding_kernel

    # Raise the scoped VMEM limit above the 16/32 MiB defaults so multi-MiB
    # output blocks pipeline; stay well under v7x's 64 MiB physical VMEM.
    needed = (2 * tile * d_model * out_itemsize
              + 2 * tile * d_model * addend_itemsize
              + 2 * 8 * tile * 4
              + 2 * k * d_model * table_itemsize
              + tile * d_model * 4
              + tile * k * table_itemsize)
    vmem_limit = int(min(48 << 20, max(32 << 20, needed + (4 << 20))))

    cost = pl.CostEstimate(
        flops=2 * n_pad * k * d_model,
        transcendentals=0,
        bytes_accessed=(n_pad * f_used * 4                       # index reads
                        + n_pad * d_model * out_itemsize         # output writes (dominant)
                        + n_pad * d_model * addend_itemsize      # optional addend reads
                        + k * d_model * table_itemsize))

    out = pl.pallas_call(
        kernel,
        out_shape=jax.ShapeDtypeStruct((n_pad, d_model), out_dtype),
        grid_spec=pltpu.PrefetchScalarGridSpec(
            num_scalar_prefetch=1,                               # offsets -> SMEM
            grid=(n_pad // tile,),
            in_specs=in_specs,
            out_specs=pl.BlockSpec((tile, d_model), lambda i, offs: (i, 0)),
        ),
        compiler_params=pltpu.CompilerParams(
            dimension_semantics=("parallel",),
            vmem_limit_bytes=vmem_limit),
        cost_estimate=cost,
    )(*args)

    return out[:N].reshape(B, L, d_model)


# ------------------------------ reference ----------------------------------- #

def temporal_embedding_ref(x: np.ndarray, d_model: int, freq: str) -> np.ndarray:
    sizes = _vocab_sizes(freq)
    out = 0.0
    for col, c_in in enumerate(sizes):
        tab = np.asarray(fixed_embedding_table(c_in, d_model))
        out = out + tab[x[:, :, col]]
    return out


# --------------------------------- main ------------------------------------- #

if __name__ == "__main__":
    B, L, d_model = 2, 8, 32
    freq = "t"  # exercise all five embeddings (incl. minute)
    vocab_sizes = _vocab_sizes(freq)

    key = jax.random.PRNGKey(0)
    cols = []
    for vs in vocab_sizes:
        key, sub = jax.random.split(key)
        cols.append(jax.random.randint(sub, (B, L), 0, vs, dtype=jnp.int32))
    x = jnp.stack(cols, axis=-1)  # (B, L, 5) int32 time-feature marks

    key, sub = jax.random.split(key)
    addend = jax.random.normal(sub, (B, L, d_model), dtype=jnp.float32)

    ref = temporal_embedding_ref(np.asarray(x), d_model, freq)

    # 1) f32 table + f32 output: parity with the PyTorch reference.
    tab_f32, offs = make_fused_temporal_table(d_model, freq, jnp.float32)
    out_f32 = jax.block_until_ready(temporal_embedding(x, tab_f32, offs))
    assert out_f32.shape == (B, L, d_model)
    np.testing.assert_allclose(np.asarray(out_f32), ref, rtol=1e-5, atol=1e-5)

    # 2) fused DataEmbedding-style addend: one pass, no extra HBM round-trip.
    out_add = jax.block_until_ready(temporal_embedding(x, tab_f32, offs, addend=addend))
    np.testing.assert_allclose(np.asarray(out_add), ref + np.asarray(addend),
                               rtol=1e-5, atol=1e-5)

    # 3) bf16 table + bf16 output: the HBM-write-bound production path.
    tab_bf16, _ = make_fused_temporal_table(d_model, freq, jnp.bfloat16)
    out_bf16 = jax.block_until_ready(
        temporal_embedding(x, tab_bf16, offs, out_dtype=jnp.bfloat16))
    np.testing.assert_allclose(np.asarray(out_bf16, dtype=np.float32), ref,
                               rtol=0.0, atol=6e-2)

    # 4) multi-grid-step + N-padding path (N=150, tile=128 -> grid=2, pad to 256).
    B2, L2 = 3, 50
    cols2 = []
    for vs in vocab_sizes:
        key, sub = jax.random.split(key)
        cols2.append(jax.random.randint(sub, (B2, L2), 0, vs, dtype=jnp.int32))
    x2 = jnp.stack(cols2, axis=-1)
    ref2 = temporal_embedding_ref(np.asarray(x2), d_model, freq)
    out2 = jax.block_until_ready(temporal_embedding(x2, tab_f32, offs, tile_n=128))
    np.testing.assert_allclose(np.asarray(out2), ref2, rtol=1e-5, atol=1e-5)

    print("KERNEL_OK")
</pallas_src>

<mosaic_0001>
module attributes {stable_mosaic.version = 11 : i64} {
  func.func @temporal_embedding_kernel(%arg0: i32, %arg1: memref<5xi32, #tpu.memory_space<smem>>, %arg2: memref<5x128xi32, #tpu.memory_space<vmem>>, %arg3: memref<128x32xf32, #tpu.memory_space<vmem>>, %arg4: memref<128x32xf32, #tpu.memory_space<vmem>>) attributes {dimension_semantics = [#tpu.dimension_semantics<parallel>], iteration_bounds = array<i64: 1>, scalar_prefetch = 1 : i64, scratch_operands = 0 : i64, tpu.core_type = #tpu.core_type<tc>, window_params = [{transform_indices = @transform_0, window_bounds = array<i64: 5, 128>}, {pipeline_mode = #tpu.pipeline_mode<synchronous>, transform_indices = @transform_1, window_bounds = array<i64: 128, 32>}, {transform_indices = @transform_2, window_bounds = array<i64: 128, 32>}]} {
    %0 = tpu.iota {dimensions = array<i32: 1>} : vector<128x128xi32>
    %c0 = arith.constant 0 : index
    %c0_0 = arith.constant 0 : index
    %1 = vector.load %arg2[%c0, %c0_0] : memref<5x128xi32, #tpu.memory_space<vmem>>, vector<1x128xi32>
    %2 = vector.shape_cast %1 : vector<1x128xi32> to vector<128xi32>
    %c0_1 = arith.constant 0 : index
    %3 = memref.load %arg1[%c0_1] : memref<5xi32, #tpu.memory_space<smem>>
    %4 = vector.broadcast %3 : i32 to vector<128xi32>
    %5 = arith.addi %2, %4 : vector<128xi32>
    %6 = vector.shape_cast %5 : vector<128xi32> to vector<128x1xi32>
    %7 = vector.broadcast %6 : vector<128x1xi32> to vector<128x128xi32>
    %8 = arith.cmpi eq, %0, %7 : vector<128x128xi32>
    %c1 = arith.constant 1 : index
    %c0_2 = arith.constant 0 : index
    %9 = vector.load %arg2[%c1, %c0_2] : memref<5x128xi32, #tpu.memory_space<vmem>>, vector<1x128xi32>
    %10 = vector.shape_cast %9 : vector<1x128xi32> to vector<128xi32>
    %c1_3 = arith.constant 1 : index
    %11 = memref.load %arg1[%c1_3] : memref<5xi32, #tpu.memory_space<smem>>
    %12 = vector.broadcast %11 : i32 to vector<128xi32>
    %13 = arith.addi %10, %12 : vector<128xi32>
    %14 = vector.shape_cast %13 : vector<128xi32> to vector<128x1xi32>
    %15 = vector.broadcast %14 : vector<128x1xi32> to vector<128x128xi32>
    %16 = arith.cmpi eq, %0, %15 : vector<128x128xi32>
    %17 = arith.ori %8, %16 : vector<128x128xi1>
    %c2 = arith.constant 2 : index
    %c0_4 = arith.constant 0 : index
    %18 = vector.load %arg2[%c2, %c0_4] : memref<5x128xi32, #tpu.memory_space<vmem>>, vector<1x128xi32>
    %19 = vector.shape_cast %18 : vector<1x128xi32> to vector<128xi32>
    %c2_5 = arith.constant 2 : index
    %20 = memref.load %arg1[%c2_5] : memref<5xi32, #tpu.memory_space<smem>>
    %21 = vector.broadcast %20 : i32 to vector<128xi32>
    %22 = arith.addi %19, %21 : vector<128xi32>
    %23 = vector.shape_cast %22 : vector<128xi32> to vector<128x1xi32>
    %24 = vector.broadcast %23 : vector<128x1xi32> to vector<128x128xi32>
    %25 = arith.cmpi eq, %0, %24 : vector<128x128xi32>
    %26 = arith.ori %17, %25 : vector<128x128xi1>
    %c3 = arith.constant 3 : index
    %c0_6 = arith.constant 0 : index
    %27 = vector.load %arg2[%c3, %c0_6] : memref<5x128xi32, #tpu.memory_space<vmem>>, vector<1x128xi32>
    %28 = vector.shape_cast %27 : vector<1x128xi32> to vector<128xi32>
    %c3_7 = arith.constant 3 : index
    %29 = memref.load %arg1[%c3_7] : memref<5xi32, #tpu.memory_space<smem>>
    %30 = vector.broadcast %29 : i32 to vector<128xi32>
    %31 = arith.addi %28, %30 : vector<128xi32>
    %32 = vector.shape_cast %31 : vector<128xi32> to vector<128x1xi32>
    %33 = vector.broadcast %32 : vector<128x1xi32> to vector<128x128xi32>
    %34 = arith.cmpi eq, %0, %33 : vector<128x128xi32>
    %35 = arith.ori %26, %34 : vector<128x128xi1>
    %c4 = arith.constant 4 : index
    %c0_8 = arith.constant 0 : index
    %36 = vector.load %arg2[%c4, %c0_8] : memref<5x128xi32, #tpu.memory_space<vmem>>, vector<1x128xi32>
    %37 = vector.shape_cast %36 : vector<1x128xi32> to vector<128xi32>
    %c4_9 = arith.constant 4 : index
    %38 = memref.load %arg1[%c4_9] : memref<5xi32, #tpu.memory_space<smem>>
    %39 = vector.broadcast %38 : i32 to vector<128xi32>
    %40 = arith.addi %37, %39 : vector<128xi32>
    %41 = vector.shape_cast %40 : vector<128xi32> to vector<128x1xi32>
    %42 = vector.broadcast %41 : vector<128x1xi32> to vector<128x128xi32>
    %43 = arith.cmpi eq, %0, %42 : vector<128x128xi32>
    %44 = arith.ori %35, %43 : vector<128x128xi1>
    %45 = arith.extui %44 : vector<128x128xi1> to vector<128x128xi32>
    %46 = arith.sitofp %45 : vector<128x128xi32> to vector<128x128xf32>
    %c0_10 = arith.constant 0 : index
    %c0_11 = arith.constant 0 : index
    %47 = vector.load %arg3[%c0_10, %c0_11] : memref<128x32xf32, #tpu.memory_space<vmem>>, vector<128x32xf32>
    %cst = arith.constant dense<0.000000e+00> : vector<128x32xf32>
    %48 = tpu.matmul %46, %47, %cst {dimension_numbers = #tpu.dot_dimension_numbers<[1], [0], [0], [1], [0, 0, 1, 1], [], []>} : vector<128x128xf32>, vector<128x32xf32>, vector<128x32xf32> -> vector<128x32xf32>
    %c0_12 = arith.constant 0 : index
    %c0_13 = arith.constant 0 : index
    %49 = vector.load %arg4[%c0_12, %c0_13] : memref<128x32xf32, #tpu.memory_space<vmem>>, vector<128x32xf32>
    tpu.vector_store %arg4[%c0_12, %c0_13], %48 {strides = array<i32>} : memref<128x32xf32, #tpu.memory_space<vmem>>, vector<128x32xf32>,
    return
  }
  func.func @transform_0(%arg0: i32, %arg1: memref<5xi32, #tpu.memory_space<smem>>) -> (i32, i32) {
    %c0_i32 = arith.constant 0 : i32
    %c0_i32_0 = arith.constant 0 : i32
    return %c0_i32, %arg0 : i32, i32
  }
  func.func @transform_1(%arg0: i32, %arg1: memref<5xi32, #tpu.memory_space<smem>>) -> (i32, i32) {
    %c0_i32 = arith.constant 0 : i32
    %c0_i32_0 = arith.constant 0 : i32
    %c0_i32_1 = arith.constant 0 : i32
    return %c0_i32, %c0_i32_0 : i32, i32
  }
  func.func @transform_2(%arg0: i32, %arg1: memref<5xi32, #tpu.memory_space<smem>>) -> (i32, i32) {
    %c0_i32 = arith.constant 0 : i32
    %c0_i32_0 = arith.constant 0 : i32
    return %arg0, %c0_i32 : i32, i32
  }
}

</mosaic_0001>

<llo_original>
// kernel: tpu_custom_call.1
$region0: #{tpu_custom_call.1}
  #allocation0 [shape = 'u32[]', space=smem, size = 0x4, offset = 0x4, fixed_abs, tag = 'smem constant byte address 0x4 - core index']
  #allocation1 [shape = 'u32[144,128]{1,0:T(1,128)}', space=vmem, size = 0x12000, scoped, tag = 'internal scratch']
  #allocation2 [shape = 's32[1]{0}', space=sflag, size = 0x4, scoped, tag = 'scoped memory for tpu_custom_call.1']
  #allocation3 [shape = 'u8[512]{0}', space=smem, size = 0x200, scoped, tag = 'prefetched SMEM operand 0']
  %s0 = inlined_call_operand.vmem [shape: s32[5], index: 0, kind: input, shape index: {}]
  %s1 = inlined_call_operand.vmem [shape: s32[5,128], index: 1, kind: input, shape index: {}]
  %s2 = inlined_call_operand.vmem [shape: f32[128,32], index: 2, kind: input, shape index: {}]
  %s3 = inlined_call_operand.vmem [shape: f32[128,32], index: 3, kind: output, shape index: {}]
  %s4 = sld [smem:[#allocation0]]
  $region18: #{tpu_custom_call.1} parent=0
    _
  %s6 = ssub.s32 1, %s4
  %s7 = scalar_select 0, %s6, %s4
  %s8 = sshll.u32 %s0, 4
  %s9 = int_to_ptr.vmem [resolvable:$true] %s8
  %11 = dma.vmem_to_smem %s9, 16, [#allocation3], [#allocation2]
  %12 = dma.done [#allocation2], 16
  %13 = sfence
  // Predicated region
  $region2: #{tpu_custom_call.1} parent=0 // pred_check
    _
  $region3: #{tpu_custom_call.1} parent=0 // pred_check_branch
    %15 = sbr.rel (0) target = $region5
  $region4: #{tpu_custom_call.1} parent=0 // pred_region
    _
  $region5: #{tpu_custom_call.1} parent=0 // pred_fallthru
    _
  // Predicated region
  $region6: #{tpu_custom_call.1} parent=0 // pred_check
    _
  $region7: #{tpu_custom_call.1} parent=0 // pred_check_branch
    %17 = sbr.rel (0) target = $region9
  $region8: #{tpu_custom_call.1} parent=0 // pred_region
    _
  $region9: #{tpu_custom_call.1} parent=0 // pred_fallthru
    _
  %v18 = vlaneseq
  %v19 = vand.u32 %v18, 127
  %v20 = vld [vmem:[%s1] sm:$0x1]
  %s21 = sld [smem:[#allocation3]]
  %v22 = vstv %s21
  %v23 = vadd.s32 %v20, %v22
  %v24 = vlaneseq
  %v25 = vshrl.u32 %v24, 7
  %v26 = vsub.s32 0, %v25
  %v27 = vrot.slane %v23, %v26
  %29 = vbcast.lane.b32.xlu0 %v27, 256
  %v30 = vpop.permute.xlu0 %29
  %s32 = sor.u32 256, 8
  %33 = vbcast.lane.b32.xlu0 %v27, %s32
  %v34 = vpop.permute.xlu0 %33
  %s36 = sor.u32 256, 16
  %37 = vbcast.lane.b32.xlu0 %v27, %s36
  %v38 = vpop.permute.xlu0 %37
  %s40 = sor.u32 256, 24
  %41 = vbcast.lane.b32.xlu0 %v27, %s40
  %v42 = vpop.permute.xlu0 %41
  %s44 = sor.u32 256, 32
  %45 = vbcast.lane.b32.xlu0 %v27, %s44
  %v46 = vpop.permute.xlu0 %45
  %s48 = sor.u32 256, 40
  %49 = vbcast.lane.b32.xlu0 %v27, %s48
  %v50 = vpop.permute.xlu0 %49
  %s52 = sor.u32 256, 48
  %53 = vbcast.lane.b32.xlu0 %v27, %s52
  %v54 = vpop.permute.xlu0 %53
  %s56 = sor.u32 256, 56
  %57 = vbcast.lane.b32.xlu0 %v27, %s56
  %v58 = vpop.permute.xlu0 %57
  %s60 = sor.u32 256, 64
  %61 = vbcast.lane.b32.xlu0 %v27, %s60
  %v62 = vpop.permute.xlu0 %61
  %s64 = sor.u32 256, 72
  %65 = vbcast.lane.b32.xlu0 %v27, %s64
  %v66 = vpop.permute.xlu0 %65
  %s68 = sor.u32 256, 80
  %69 = vbcast.lane.b32.xlu0 %v27, %s68
  %v70 = vpop.permute.xlu0 %69
  %s72 = sor.u32 256, 88
  %73 = vbcast.lane.b32.xlu0 %v27, %s72
  %v74 = vpop.permute.xlu0 %73
  %s76 = sor.u32 256, 96
  %77 = vbcast.lane.b32.xlu0 %v27, %s76
  %v78 = vpop.permute.xlu0 %77
  %s80 = sor.u32 256, 104
  %81 = vbcast.lane.b32.xlu0 %v27, %s80
  %v82 = vpop.permute.xlu0 %81
  %s84 = sor.u32 256, 112
  %85 = vbcast.lane.b32.xlu0 %v27, %s84
  %v86 = vpop.permute.xlu0 %85
  %s88 = sor.u32 256, 120
  %89 = vbcast.lane.b32.xlu0 %v27, %s88
  %v90 = vpop.permute.xlu0 %89
  %vm91 = vcmp.eq.s32.totalorder %v19, %v30
  %vm92 = vcmp.eq.s32.totalorder %v19, %v34
  %vm93 = vcmp.eq.s32.totalorder %v19, %v38
  %vm94 = vcmp.eq.s32.totalorder %v19, %v42
  %vm95 = vcmp.eq.s32.totalorder %v19, %v46
  %vm96 = vcmp.eq.s32.totalorder %v19, %v50
  %vm97 = vcmp.eq.s32.totalorder %v19, %v54
  %vm98 = vcmp.eq.s32.totalorder %v19, %v58
  %vm99 = vcmp.eq.s32.totalorder %v19, %v62
  %vm100 = vcmp.eq.s32.totalorder %v19, %v66
  %vm101 = vcmp.eq.s32.totalorder %v19, %v70
  %vm102 = vcmp.eq.s32.totalorder %v19, %v74
  %vm103 = vcmp.eq.s32.totalorder %v19, %v78
  %vm104 = vcmp.eq.s32.totalorder %v19, %v82
  %vm105 = vcmp.eq.s32.totalorder %v19, %v86
  %vm106 = vcmp.eq.s32.totalorder %v19, %v90
  %v107 = vld [vmem:[%s1 + $0x1] sm:$0x1]
  %s108 = sld [smem:[#allocation3 + $0x1]]
  %v109 = vstv %s108
  %v110 = vadd.s32 %v107, %v109
  %v111 = vlaneseq
  %v112 = vshrl.u32 %v111, 7
  %v113 = vsub.s32 0, %v112
  %v114 = vrot.slane %v110, %v113
  %116 = vbcast.lane.b32.xlu0 %v114, 256
  %v117 = vpop.permute.xlu0 %116
  %s119 = sor.u32 256, 8
  %120 = vbcast.lane.b32.xlu0 %v114, %s119
  %v121 = vpop.permute.xlu0 %120
  %s123 = sor.u32 256, 16
  %124 = vbcast.lane.b32.xlu0 %v114, %s123
  %v125 = vpop.permute.xlu0 %124
  %s127 = sor.u32 256, 24
  %128 = vbcast.lane.b32.xlu0 %v114, %s127
  %v129 = vpop.permute.xlu0 %128
  %s131 = sor.u32 256, 32
  %132 = vbcast.lane.b32.xlu0 %v114, %s131
  %v133 = vpop.permute.xlu0 %132
  %s135 = sor.u32 256, 40
  %136 = vbcast.lane.b32.xlu0 %v114, %s135
  %v137 = vpop.permute.xlu0 %136
  %s139 = sor.u32 256, 48
  %140 = vbcast.lane.b32.xlu0 %v114, %s139
  %v141 = vpop.permute.xlu0 %140
  %s143 = sor.u32 256, 56
  %144 = vbcast.lane.b32.xlu0 %v114, %s143
  %v145 = vpop.permute.xlu0 %144
  %s147 = sor.u32 256, 64
  %148 = vbcast.lane.b32.xlu0 %v114, %s147
  %v149 = vpop.permute.xlu0 %148
  %s151 = sor.u32 256, 72
  %152 = vbcast.lane.b32.xlu0 %v114, %s151
  %v153 = vpop.permute.xlu0 %152
  %s155 = sor.u32 256, 80
  %156 = vbcast.lane.b32.xlu0 %v114, %s155
  %v157 = vpop.permute.xlu0 %156
  %s159 = sor.u32 256, 88
  %160 = vbcast.lane.b32.xlu0 %v114, %s159
  %v161 = vpop.permute.xlu0 %160
  %s163 = sor.u32 256, 96
  %164 = vbcast.lane.b32.xlu0 %v114, %s163
  %v165 = vpop.permute.xlu0 %164
  %s167 = sor.u32 256, 104
  %168 = vbcast.lane.b32.xlu0 %v114, %s167
  %v169 = vpop.permute.xlu0 %168
  %s171 = sor.u32 256, 112
  %172 = vbcast.lane.b32.xlu0 %v114, %s171
  %v173 = vpop.permute.xlu0 %172
  %s175 = sor.u32 256, 120
  %176 = vbcast.lane.b32.xlu0 %v114, %s175
  %v177 = vpop.permute.xlu0 %176
  %vm178 = vcmp.eq.s32.totalorder %v19, %v117
  %vm179 = vcmp.eq.s32.totalorder %v19, %v121
  %vm180 = vcmp.eq.s32.totalorder %v19, %v125
  %vm181 = vcmp.eq.s32.totalorder %v19, %v129
  %vm182 = vcmp.eq.s32.totalorder %v19, %v133
  %vm183 = vcmp.eq.s32.totalorder %v19, %v137
  %vm184 = vcmp.eq.s32.totalorder %v19, %v141
  %vm185 = vcmp.eq.s32.totalorder %v19, %v145
  %vm186 = vcmp.eq.s32.totalorder %v19, %v149
  %vm187 = vcmp.eq.s32.totalorder %v19, %v153
  %vm188 = vcmp.eq.s32.totalorder %v19, %v157
  %vm189 = vcmp.eq.s32.totalorder %v19, %v161
  %vm190 = vcmp.eq.s32.totalorder %v19, %v165
  %vm191 = vcmp.eq.s32.totalorder %v19, %v169
  %vm192 = vcmp.eq.s32.totalorder %v19, %v173
  %vm193 = vcmp.eq.s32.totalorder %v19, %v177
  %vm194 = vmor %vm91, %vm178
  %vm195 = vmor %vm92, %vm179
  %vm196 = vmor %vm93, %vm180
  %vm197 = vmor %vm94, %vm181
  %vm198 = vmor %vm95, %vm182
  %vm199 = vmor %vm96, %vm183
  %vm200 = vmor %vm97, %vm184
  %vm201 = vmor %vm98, %vm185
  %vm202 = vmor %vm99, %vm186
  %vm203 = vmor %vm100, %vm187
  %vm204 = vmor %vm101, %vm188
  %vm205 = vmor %vm102, %vm189
  %vm206 = vmor %vm103, %vm190
  %vm207 = vmor %vm104, %vm191
  %vm208 = vmor %vm105, %vm192
  %vm209 = vmor %vm106, %vm193
  %v210 = vld [vmem:[%s1 + $0x2] sm:$0x1]
  %s211 = sld [smem:[#allocation3 + $0x2]]
  %v212 = vstv %s211
  %v213 = vadd.s32 %v210, %v212
  %v214 = vlaneseq
  %v215 = vshrl.u32 %v214, 7
  %v216 = vsub.s32 0, %v215
  %v217 = vrot.slane %v213, %v216
  %219 = vbcast.lane.b32.xlu0 %v217, 256
  %v220 = vpop.permute.xlu0 %219
  %s222 = sor.u32 256, 8
  %223 = vbcast.lane.b32.xlu0 %v217, %s222
  %v224 = vpop.permute.xlu0 %223
  %s226 = sor.u32 256, 16
  %227 = vbcast.lane.b32.xlu0 %v217, %s226
  %v228 = vpop.permute.xlu0 %227
  %s230 = sor.u32 256, 24
  %231 = vbcast.lane.b32.xlu0 %v217, %s230
  %v232 = vpop.permute.xlu0 %231
  %s234 = sor.u32 256, 32
  %235 = vbcast.lane.b32.xlu0 %v217, %s234
  %v236 = vpop.permute.xlu0 %235
  %s238 = sor.u32 256, 40
  %239 = vbcast.lane.b32.xlu0 %v217, %s238
  %v240 = vpop.permute.xlu0 %239
  %s242 = sor.u32 256, 48
  %243 = vbcast.lane.b32.xlu0 %v217, %s242
  %v244 = vpop.permute.xlu0 %243
  %s246 = sor.u32 256, 56
  %247 = vbcast.lane.b32.xlu0 %v217, %s246
  %v248 = vpop.permute.xlu0 %247
  %s250 = sor.u32 256, 64
  %251 = vbcast.lane.b32.xlu0 %v217, %s250
  %v252 = vpop.permute.xlu0 %251
  %s254 = sor.u32 256, 72
  %255 = vbcast.lane.b32.xlu0 %v217, %s254
  %v256 = vpop.permute.xlu0 %255
  %s258 = sor.u32 256, 80
  %259 = vbcast.lane.b32.xlu0 %v217, %s258
  %v260 = vpop.permute.xlu0 %259
  %s262 = sor.u32 256, 88
  %263 = vbcast.lane.b32.xlu0 %v217, %s262
  %v264 = vpop.permute.xlu0 %263
  %s266 = sor.u32 256, 96
  %267 = vbcast.lane.b32.xlu0 %v217, %s266
  %v268 = vpop.permute.xlu0 %267
  %s270 = sor.u32 256, 104
  %271 = vbcast.lane.b32.xlu0 %v217, %s270
  %v272 = vpop.permute.xlu0 %271
  %s274 = sor.u32 256, 112
  %275 = vbcast.lane.b32.xlu0 %v217, %s274
  %v276 = vpop.permute.xlu0 %275
  %s278 = sor.u32 256, 120
  %279 = vbcast.lane.b32.xlu0 %v217, %s278
  %v280 = vpop.permute.xlu0 %279
  %vm281 = vcmp.eq.s32.totalorder %v19, %v220
  %vm282 = vcmp.eq.s32.totalorder %v19, %v224
  %vm283 = vcmp.eq.s32.totalorder %v19, %v228
  %vm284 = vcmp.eq.s32.totalorder %v19, %v232
  %vm285 = vcmp.eq.s32.totalorder %v19, %v236
  %vm286 = vcmp.eq.s32.totalorder %v19, %v240
  %vm287 = vcmp.eq.s32.totalorder %v19, %v244
  %vm288 = vcmp.eq.s32.totalorder %v19, %v248
  %vm289 = vcmp.eq.s32.totalorder %v19, %v252
  %vm290 = vcmp.eq.s32.totalorder %v19, %v256
  %vm291 = vcmp.eq.s32.totalorder %v19, %v260
  %vm292 = vcmp.eq.s32.totalorder %v19, %v264
  %vm293 = vcmp.eq.s32.totalorder %v19, %v268
  %vm294 = vcmp.eq.s32.totalorder %v19, %v272
  %vm295 = vcmp.eq.s32.totalorder %v19, %v276
  %vm296 = vcmp.eq.s32.totalorder %v19, %v280
  %vm297 = vmor %vm194, %vm281
  %vm298 = vmor %vm195, %vm282
  %vm299 = vmor %vm196, %vm283
  %vm300 = vmor %vm197, %vm284
  %vm301 = vmor %vm198, %vm285
  %vm302 = vmor %vm199, %vm286
  %vm303 = vmor %vm200, %vm287
  %vm304 = vmor %vm201, %vm288
  %vm305 = vmor %vm202, %vm289
  %vm306 = vmor %vm203, %vm290
  %vm307 = vmor %vm204, %vm291
  %vm308 = vmor %vm205, %vm292
  %vm309 = vmor %vm206, %vm293
  %vm310 = vmor %vm207, %vm294
  %vm311 = vmor %vm208, %vm295
  %vm312 = vmor %vm209, %vm296
  %v313 = vld [vmem:[%s1 + $0x3] sm:$0x1]
  %s314 = sld [smem:[#allocation3 + $0x3]]
  %v315 = vstv %s314
  %v316 = vadd.s32 %v313, %v315
  %v317 = vlaneseq
  %v318 = vshrl.u32 %v317, 7
  %v319 = vsub.s32 0, %v318
  %v320 = vrot.slane %v316, %v319
  %322 = vbcast.lane.b32.xlu0 %v320, 256
  %v323 = vpop.permute.xlu0 %322
  %s325 = sor.u32 256, 8
  %326 = vbcast.lane.b32.xlu0 %v320, %s325
  %v327 = vpop.permute.xlu0 %326
  %s329 = sor.u32 256, 16
  %330 = vbcast.lane.b32.xlu0 %v320, %s329
  %v331 = vpop.permute.xlu0 %330
  %s333 = sor.u32 256, 24
  %334 = vbcast.lane.b32.xlu0 %v320, %s333
  %v335 = vpop.permute.xlu0 %334
  %s337 = sor.u32 256, 32
  %338 = vbcast.lane.b32.xlu0 %v320, %s337
  %v339 = vpop.permute.xlu0 %338
  %s341 = sor.u32 256, 40
  %342 = vbcast.lane.b32.xlu0 %v320, %s341
  %v343 = vpop.permute.xlu0 %342
  %s345 = sor.u32 256, 48
  %346 = vbcast.lane.b32.xlu0 %v320, %s345
  %v347 = vpop.permute.xlu0 %346
  %s349 = sor.u32 256, 56
  %350 = vbcast.lane.b32.xlu0 %v320, %s349
  %v351 = vpop.permute.xlu0 %350
  %s353 = sor.u32 256, 64
  %354 = vbcast.lane.b32.xlu0 %v320, %s353
  %v355 = vpop.permute.xlu0 %354
  %s357 = sor.u32 256, 72
  %358 = vbcast.lane.b32.xlu0 %v320, %s357
  %v359 = vpop.permute.xlu0 %358
  %s361 = sor.u32 256, 80
  %362 = vbcast.lane.b32.xlu0 %v320, %s361
  %v363 = vpop.permute.xlu0 %362
  %s365 = sor.u32 256, 88
  %366 = vbcast.lane.b32.xlu0 %v320, %s365
  %v367 = vpop.permute.xlu0 %366
  %s369 = sor.u32 256, 96
  %370 = vbcast.lane.b32.xlu0 %v320, %s369
  %v371 = vpop.permute.xlu0 %370
  %s373 = sor.u32 256, 104
  %374 = vbcast.lane.b32.xlu0 %v320, %s373
  %v375 = vpop.permute.xlu0 %374
  %s377 = sor.u32 256, 112
  %378 = vbcast.lane.b32.xlu0 %v320, %s377
  %v379 = vpop.permute.xlu0 %378
  %s381 = sor.u32 256, 120
  %382 = vbcast.lane.b32.xlu0 %v320, %s381
  %v383 = vpop.permute.xlu0 %382
  %vm384 = vcmp.eq.s32.totalorder %v19, %v323
  %vm385 = vcmp.eq.s32.totalorder %v19, %v327
  %vm386 = vcmp.eq.s32.totalorder %v19, %v331
  %vm387 = vcmp.eq.s32.totalorder %v19, %v335
  %vm388 = vcmp.eq.s32.totalorder %v19, %v339
  %vm389 = vcmp.eq.s32.totalorder %v19, %v343
  %vm390 = vcmp.eq.s32.totalorder %v19, %v347
  %vm391 = vcmp.eq.s32.totalorder %v19, %v351
  %vm392 = vcmp.eq.s32.totalorder %v19, %v355
  %vm393 = vcmp.eq.s32.totalorder %v19, %v359
  %vm394 = vcmp.eq.s32.totalorder %v19, %v363
  %vm395 = vcmp.eq.s32.totalorder %v19, %v367
  %vm396 = vcmp.eq.s32.totalorder %v19, %v371
  %vm397 = vcmp.eq.s32.totalorder %v19, %v375
  %vm398 = vcmp.eq.s32.totalorder %v19, %v379
  %vm399 = vcmp.eq.s32.totalorder %v19, %v383
  %vm400 = vmor %vm297, %vm384
  %vm401 = vmor %vm298, %vm385
  %vm402 = vmor %vm299, %vm386
  %vm403 = vmor %vm300, %vm387
  %vm404 = vmor %vm301, %vm388
  %vm405 = vmor %vm302, %vm389
  %vm406 = vmor %vm303, %vm390
  %vm407 = vmor %vm304, %vm391
  %vm408 = vmor %vm305, %vm392
  %vm409 = vmor %vm306, %vm393
  %vm410 = vmor %vm307, %vm394
  %vm411 = vmor %vm308, %vm395
  %vm412 = vmor %vm309, %vm396
  %vm413 = vmor %vm310, %vm397
  %vm414 = vmor %vm311, %vm398
  %vm415 = vmor %vm312, %vm399
  %v416 = vld [vmem:[%s1 + $0x4] sm:$0x1]
  %s417 = sld [smem:[#allocation3 + $0x4]]
  %v418 = vstv %s417
  %v419 = vadd.s32 %v416, %v418
  %v420 = vlaneseq
  %v421 = vshrl.u32 %v420, 7
  %v422 = vsub.s32 0, %v421
  %v423 = vrot.slane %v419, %v422
  %425 = vbcast.lane.b32.xlu0 %v423, 256
  %v426 = vpop.permute.xlu0 %425
  %s428 = sor.u32 256, 8
  %429 = vbcast.lane.b32.xlu0 %v423, %s428
  %v430 = vpop.permute.xlu0 %429
  %s432 = sor.u32 256, 16
  %433 = vbcast.lane.b32.xlu0 %v423, %s432
  %v434 = vpop.permute.xlu0 %433
  %s436 = sor.u32 256, 24
  %437 = vbcast.lane.b32.xlu0 %v423, %s436
  %v438 = vpop.permute.xlu0 %437
  %s440 = sor.u32 256, 32
  %441 = vbcast.lane.b32.xlu0 %v423, %s440
  %v442 = vpop.permute.xlu0 %441
  %s444 = sor.u32 256, 40
  %445 = vbcast.lane.b32.xlu0 %v423, %s444
  %v446 = vpop.permute.xlu0 %445
  %s448 = sor.u32 256, 48
  %449 = vbcast.lane.b32.xlu0 %v423, %s448
  %v450 = vpop.permute.xlu0 %449
  %s452 = sor.u32 256, 56
  %453 = vbcast.lane.b32.xlu0 %v423, %s452
  %v454 = vpop.permute.xlu0 %453
  %s456 = sor.u32 256, 64
  %457 = vbcast.lane.b32.xlu0 %v423, %s456
  %v458 = vpop.permute.xlu0 %457
  %s460 = sor.u32 256, 72
  %461 = vbcast.lane.b32.xlu0 %v423, %s460
  %v462 = vpop.permute.xlu0 %461
  %s464 = sor.u32 256, 80
  %465 = vbcast.lane.b32.xlu0 %v423, %s464
  %v466 = vpop.permute.xlu0 %465
  %s468 = sor.u32 256, 88
  %469 = vbcast.lane.b32.xlu0 %v423, %s468
  %v470 = vpop.permute.xlu0 %469
  %s472 = sor.u32 256, 96
  %473 = vbcast.lane.b32.xlu0 %v423, %s472
  %v474 = vpop.permute.xlu0 %473
  %s476 = sor.u32 256, 104
  %477 = vbcast.lane.b32.xlu0 %v423, %s476
  %v478 = vpop.permute.xlu0 %477
  %s480 = sor.u32 256, 112
  %481 = vbcast.lane.b32.xlu0 %v423, %s480
  %v482 = vpop.permute.xlu0 %481
  %s484 = sor.u32 256, 120
  %485 = vbcast.lane.b32.xlu0 %v423, %s484
  %v486 = vpop.permute.xlu0 %485
  %vm487 = vcmp.eq.s32.totalorder %v19, %v426
  %vm488 = vcmp.eq.s32.totalorder %v19, %v430
  %vm489 = vcmp.eq.s32.totalorder %v19, %v434
  %vm490 = vcmp.eq.s32.totalorder %v19, %v438
  %vm491 = vcmp.eq.s32.totalorder %v19, %v442
  %vm492 = vcmp.eq.s32.totalorder %v19, %v446
  %vm493 = vcmp.eq.s32.totalorder %v19, %v450
  %vm494 = vcmp.eq.s32.totalorder %v19, %v454
  %vm495 = vcmp.eq.s32.totalorder %v19, %v458
  %vm496 = vcmp.eq.s32.totalorder %v19, %v462
  %vm497 = vcmp.eq.s32.totalorder %v19, %v466
  %vm498 = vcmp.eq.s32.totalorder %v19, %v470
  %vm499 = vcmp.eq.s32.totalorder %v19, %v474
  %vm500 = vcmp.eq.s32.totalorder %v19, %v478
  %vm501 = vcmp.eq.s32.totalorder %v19, %v482
  %vm502 = vcmp.eq.s32.totalorder %v19, %v486
  %vm503 = vmor %vm400, %vm487
  %vm504 = vmor %vm401, %vm488
  %vm505 = vmor %vm402, %vm489
  %vm506 = vmor %vm403, %vm490
  %vm507 = vmor %vm404, %vm491
  %vm508 = vmor %vm405, %vm492
  %vm509 = vmor %vm406, %vm493
  %vm510 = vmor %vm407, %vm494
  %vm511 = vmor %vm408, %vm495
  %vm512 = vmor %vm409, %vm496
  %vm513 = vmor %vm410, %vm497
  %vm514 = vmor %vm411, %vm498
  %vm515 = vmor %vm412, %vm499
  %vm516 = vmor %vm413, %vm500
  %vm517 = vmor %vm414, %vm501
  %vm518 = vmor %vm415, %vm502
  %v519 = vsel %vm503, 1, 0
  %v520 = vsel %vm504, 1, 0
  %v521 = vsel %vm505, 1, 0
  %v522 = vsel %vm506, 1, 0
  %v523 = vsel %vm507, 1, 0
  %v524 = vsel %vm508, 1, 0
  %v525 = vsel %vm509, 1, 0
  %v526 = vsel %vm510, 1, 0
  %v527 = vsel %vm511, 1, 0
  %v528 = vsel %vm512, 1, 0
  %v529 = vsel %vm513, 1, 0
  %v530 = vsel %vm514, 1, 0
  %v531 = vsel %vm515, 1, 0
  %v532 = vsel %vm516, 1, 0
  %v533 = vsel %vm517, 1, 0
  %v534 = vsel %vm518, 1, 0
  %v535 = vcvt.s32.f32 %v519
  %v536 = vcvt.s32.f32 %v520
  %v537 = vcvt.s32.f32 %v521
  %v538 = vcvt.s32.f32 %v522
  %v539 = vcvt.s32.f32 %v523
  %v540 = vcvt.s32.f32 %v524
  %v541 = vcvt.s32.f32 %v525
  %v542 = vcvt.s32.f32 %v526
  %v543 = vcvt.s32.f32 %v527
  %v544 = vcvt.s32.f32 %v528
  %v545 = vcvt.s32.f32 %v529
  %v546 = vcvt.s32.f32 %v530
  %v547 = vcvt.s32.f32 %v531
  %v548 = vcvt.s32.f32 %v532
  %v549 = vcvt.s32.f32 %v533
  %v550 = vcvt.s32.f32 %v534
  %v551 = vld [vmem:[%s2] sm:$0xff]
  %v552 = vld [vmem:[%s2 + $0x8] sm:$0xff]
  %v553 = vld [vmem:[%s2 + $0x10] sm:$0xff]
  %v554 = vld [vmem:[%s2 + $0x18] sm:$0xff]
  %v555 = vld [vmem:[%s2 + $0x20] sm:$0xff]
  %v556 = vld [vmem:[%s2 + $0x28] sm:$0xff]
  %v557 = vld [vmem:[%s2 + $0x30] sm:$0xff]
  %v558 = vld [vmem:[%s2 + $0x38] sm:$0xff]
  %v559 = vld [vmem:[%s2 + $0x40] sm:$0xff]
  %v560 = vld [vmem:[%s2 + $0x48] sm:$0xff]
  %v561 = vld [vmem:[%s2 + $0x50] sm:$0xff]
  %v562 = vld [vmem:[%s2 + $0x58] sm:$0xff]
  %v563 = vld [vmem:[%s2 + $0x60] sm:$0xff]
  %v564 = vld [vmem:[%s2 + $0x68] sm:$0xff]
  %v565 = vld [vmem:[%s2 + $0x70] sm:$0xff]
  %v566 = vld [vmem:[%s2 + $0x78] sm:$0xff]
  %567 = vmatprep.subr.mxu0 0.0
  %568 = vmatpush1.msra.mxu0 %v551
  %569 = vmatprep.subr.mxu0 0.0
  %570 = vmatpush1.msra.mxu0 %v552
  %571 = vmatprep.subr.mxu0 0.0
  %572 = vmatpush1.msra.mxu0 %v553
  %573 = vmatprep.subr.mxu0 0.0
  %574 = vmatpush1.msra.mxu0 %v554
  %575 = vmatprep.subr.mxu0 0.0
  %576 = vmatpush1.msra.mxu0 %v555
  %577 = vmatprep.subr.mxu0 0.0
  %578 = vmatpush1.msra.mxu0 %v556
  %579 = vmatprep.subr.mxu0 0.0
  %580 = vmatpush1.msra.mxu0 %v557
  %581 = vmatprep.subr.mxu0 0.0
  %582 = vmatpush1.msra.mxu0 %v558
  %583 = vmatprep.subr.mxu0 0.0
  %584 = vmatpush1.msra.mxu0 %v559
  %585 = vmatprep.subr.mxu0 0.0
  %586 = vmatpush1.msra.mxu0 %v560
  %587 = vmatprep.subr.mxu0 0.0
  %588 = vmatpush1.msra.mxu0 %v561
  %589 = vmatprep.subr.mxu0 0.0
  %590 = vmatpush1.msra.mxu0 %v562
  %591 = vmatprep.subr.mxu0 0.0
  %592 = vmatpush1.msra.mxu0 %v563
  %593 = vmatprep.subr.mxu0 0.0
  %594 = vmatpush1.msra.mxu0 %v564
  %595 = vmatprep.subr.mxu0 0.0
  %596 = vmatpush1.msra.mxu0 %v565
  %597 = vmatprep.subr.mxu0 0.0
  %598 = vmatpush1.msra.mxu0 %v566
  %599 = vmatprep.subr.mxu0 0.0
  %600 = vmatpush1.msra.mxu0 0.0
  %601 = vmatprep.subr.mxu0 0.0
  %602 = vmatpush1.msra.mxu0 0.0
  %603 = vmatprep.subr.mxu0 0.0
  %604 = vmatpush1.msra.mxu0 0.0
  %605 = vmatprep.subr.mxu0 0.0
  %606 = vmatpush1.msra.mxu0 0.0
  %607 = vmatprep.subr.mxu0 0.0
  %608 = vmatpush1.msra.mxu0 0.0
  %609 = vmatprep.subr.mxu0 0.0
  %610 = vmatpush1.msra.mxu0 0.0
  %611 = vmatprep.subr.mxu0 0.0
  %612 = vmatpush1.msra.mxu0 0.0
  %613 = vmatprep.subr.mxu0 0.0
  %614 = vmatpush1.msra.mxu0 0.0
  %615 = vmatprep.subr.mxu0 0.0
  %616 = vmatpush1.msra.mxu0 0.0
  %617 = vmatprep.subr.mxu0 0.0
  %618 = vmatpush1.msra.mxu0 0.0
  %619 = vmatprep.subr.mxu0 0.0
  %620 = vmatpush1.msra.mxu0 0.0
  %621 = vmatprep.subr.mxu0 0.0
  %622 = vmatpush1.msra.mxu0 0.0
  %623 = vmatprep.subr.mxu0 0.0
  %624 = vmatpush1.msra.mxu0 0.0
  %625 = vmatprep.subr.mxu0 0.0
  %626 = vmatpush1.msra.mxu0 0.0
  %627 = vmatprep.subr.mxu0 0.0
  %628 = vmatpush1.msra.mxu0 0.0
  %629 = vmatprep.subr.mxu0 0.0
  %630 = vmatpush1.msra.mxu0 0.0
  %631 = vmatprep.mubr.f32.mxu0 0.0
  %632 = vmatmul.mubr.f32.gmra.mrb[0].mxu0 %v535
  %v633 = vpop.f32.mrb[0].mxu0
  %v634 = vadd.f32 0.0, %v633
  %v635 = vpop.f32.mrb[0].mxu0
  %636 = vmatprep.mubr.f32.mxu0 0.0
  %637 = vmatmul.mubr.f32.gmra.mrb[0].mxu0 %v536
  %v638 = vpop.f32.mrb[0].mxu0
  %v639 = vadd.f32 0.0, %v638
  %v640 = vpop.f32.mrb[0].mxu0
  %641 = vmatprep.mubr.f32.mxu0 0.0
  %642 = vmatmul.mubr.f32.gmra.mrb[0].mxu0 %v537
  %v643 = vpop.f32.mrb[0].mxu0
  %v644 = vadd.f32 0.0, %v643
  %v645 = vpop.f32.mrb[0].mxu0
  %646 = vmatprep.mubr.f32.mxu0 0.0
  %647 = vmatmul.mubr.f32.gmra.mrb[0].mxu0 %v538
  %v648 = vpop.f32.mrb[0].mxu0
  %v649 = vadd.f32 0.0, %v648
  %v650 = vpop.f32.mrb[0].mxu0
  %651 = vmatprep.mubr.f32.mxu0 0.0
  %652 = vmatmul.mubr.f32.gmra.mrb[0].mxu0 %v539
  %v653 = vpop.f32.mrb[0].mxu0
  %v654 = vadd.f32 0.0, %v653
  %v655 = vpop.f32.mrb[0].mxu0
  %656 = vmatprep.mubr.f32.mxu0 0.0
  %657 = vmatmul.mubr.f32.gmra.mrb[0].mxu0 %v540
  %v658 = vpop.f32.mrb[0].mxu0
  %v659 = vadd.f32 0.0, %v658
  %v660 = vpop.f32.mrb[0].mxu0
  %661 = vmatprep.mubr.f32.mxu0 0.0
  %662 = vmatmul.mubr.f32.gmra.mrb[0].mxu0 %v541
  %v663 = vpop.f32.mrb[0].mxu0
  %v664 = vadd.f32 0.0, %v663
  %v665 = vpop.f32.mrb[0].mxu0
  %666 = vmatprep.mubr.f32.mxu0 0.0
  %667 = vmatmul.mubr.f32.gmra.mrb[0].mxu0 %v542
  %v668 = vpop.f32.mrb[0].mxu0
  %v669 = vadd.f32 0.0, %v668
  %v670 = vpop.f32.mrb[0].mxu0
  %671 = vmatprep.mubr.f32.mxu0 0.0
  %672 = vmatmul.mubr.f32.gmra.mrb[0].mxu0 %v543
  %v673 = vpop.f32.mrb[0].mxu0
  %v674 = vadd.f32 0.0, %v673
  %v675 = vpop.f32.mrb[0].mxu0
  %676 = vmatprep.mubr.f32.mxu0 0.0
  %677 = vmatmul.mubr.f32.gmra.mrb[0].mxu0 %v544
  %v678 = vpop.f32.mrb[0].mxu0
  %v679 = vadd.f32 0.0, %v678
  %v680 = vpop.f32.mrb[0].mxu0
  %681 = vmatprep.mubr.f32.mxu0 0.0
  %682 = vmatmul.mubr.f32.gmra.mrb[0].mxu0 %v545
  %v683 = vpop.f32.mrb[0].mxu0
  %v684 = vadd.f32 0.0, %v683
  %v685 = vpop.f32.mrb[0].mxu0
  %686 = vmatprep.mubr.f32.mxu0 0.0
  %687 = vmatmul.mubr.f32.gmra.mrb[0].mxu0 %v546
  %v688 = vpop.f32.mrb[0].mxu0
  %v689 = vadd.f32 0.0, %v688
  %v690 = vpop.f32.mrb[0].mxu0
  %691 = vmatprep.mubr.f32.mxu0 0.0
  %692 = vmatmul.mubr.f32.gmra.mrb[0].mxu0 %v547
  %v693 = vpop.f32.mrb[0].mxu0
  %v694 = vadd.f32 0.0, %v693
  %v695 = vpop.f32.mrb[0].mxu0
  %696 = vmatprep.mubr.f32.mxu0 0.0
  %697 = vmatmul.mubr.f32.gmra.mrb[0].mxu0 %v548
  %v698 = vpop.f32.mrb[0].mxu0
  %v699 = vadd.f32 0.0, %v698
  %v700 = vpop.f32.mrb[0].mxu0
  %701 = vmatprep.mubr.f32.mxu0 0.0
  %702 = vmatmul.mubr.f32.gmra.mrb[0].mxu0 %v549
  %v703 = vpop.f32.mrb[0].mxu0
  %v704 = vadd.f32 0.0, %v703
  %v705 = vpop.f32.mrb[0].mxu0
  %706 = vmatprep.mubr.f32.mxu0 0.0
  %707 = vmatmul.mubr.f32.gmra.mrb[0].mxu0 %v550
  %v708 = vpop.f32.mrb[0].mxu0
  %v709 = vadd.f32 0.0, %v708
  %v710 = vpop.f32.mrb[0].mxu0
  %711 = vdwg.mxu0
  %vm712 = vcmask 261120
  %713 = vst.msk [vmem:[%s3] sm:$0xff] %vm712, %v634
  %714 = vst.msk [vmem:[%s3 + $0x8] sm:$0xff] %vm712, %v639
  %715 = vst.msk [vmem:[%s3 + $0x10] sm:$0xff] %vm712, %v644
  %716 = vst.msk [vmem:[%s3 + $0x18] sm:$0xff] %vm712, %v649
  %717 = vst.msk [vmem:[%s3 + $0x20] sm:$0xff] %vm712, %v654
  %718 = vst.msk [vmem:[%s3 + $0x28] sm:$0xff] %vm712, %v659
  %719 = vst.msk [vmem:[%s3 + $0x30] sm:$0xff] %vm712, %v664
  %720 = vst.msk [vmem:[%s3 + $0x38] sm:$0xff] %vm712, %v669
  %721 = vst.msk [vmem:[%s3 + $0x40] sm:$0xff] %vm712, %v674
  %722 = vst.msk [vmem:[%s3 + $0x48] sm:$0xff] %vm712, %v679
  %723 = vst.msk [vmem:[%s3 + $0x50] sm:$0xff] %vm712, %v684
  %724 = vst.msk [vmem:[%s3 + $0x58] sm:$0xff] %vm712, %v689
  %725 = vst.msk [vmem:[%s3 + $0x60] sm:$0xff] %vm712, %v694
  %726 = vst.msk [vmem:[%s3 + $0x68] sm:$0xff] %vm712, %v699
  %727 = vst.msk [vmem:[%s3 + $0x70] sm:$0xff] %vm712, %v704
  %728 = vst.msk [vmem:[%s3 + $0x78] sm:$0xff] %vm712, %v709
  // Predicated region
  $region10: #{tpu_custom_call.1} parent=0 // pred_check
    _
  $region11: #{tpu_custom_call.1} parent=0 // pred_check_branch
    %730 = sbr.rel (0) target = $region13
  $region12: #{tpu_custom_call.1} parent=0 // pred_region
    _
  $region13: #{tpu_custom_call.1} parent=0 // pred_fallthru
    _
  // Predicated region
  $region14: #{tpu_custom_call.1} parent=0 // pred_check
    _
  $region15: #{tpu_custom_call.1} parent=0 // pred_check_branch
    %732 = sbr.rel (0) target = $region17
  $region16: #{tpu_custom_call.1} parent=0 // pred_region
    _
  $region17: #{tpu_custom_call.1} parent=0 // pred_fallthru
    _

</llo_original>
